<compile_context>
chip_gen: v7x
topology: tpu7x:2x2x1
jax: 0.10.0
libtpu: 0.0.40
codegen_flags: <defaults>
</compile_context>

<pallas_src>
import functools

import jax
import jax.numpy as jnp
from jax.experimental import pallas as pl
from jax.experimental.pallas import tpu as pltpu


def _round_up(x, m):
    return ((x + m - 1) // m) * m


# ---------------------------------------------------------------------------
# Kernel: one grid step = one hidden layer for one batch tile.
# grid = (num_batch_tiles ["parallel"], n_layers ["arbitrary"])
# ---------------------------------------------------------------------------
def _mlp_layer_kernel(x_ref, wenc_ref, benc_ref, wh_ref, bh_ref,
                      wdec_ref, bdec_ref, o_ref, h_ref):
    # x_ref:(Bt,Kp)  wenc:(Kp,Hp)  benc:(1,Hp)
    # wh_ref:(1,Hp,Hp) streamed per layer   bh_ref:(1,1,Hp)
    # wdec:(Hp,Np)  bdec:(1,Np)  o_ref:(Bt,Np)
    # h_ref:(Bt,Hp) compute-dtype VMEM scratch, persists across the layer axis.
    l = pl.program_id(1)
    last = pl.num_programs(1) - 1

    # Encoder + ReLU at the first layer step of every batch tile.
    @pl.when(l == 0)
    def _():
        h = jnp.dot(x_ref[...], wenc_ref[...],
                    preferred_element_type=jnp.float32)
        h_ref[...] = jnp.maximum(h + benc_ref[...], 0.0).astype(h_ref.dtype)

    # Hidden layer l: Linear (f32 MXU accumulation) + bias + ReLU, single cast.
    hi = jnp.dot(h_ref[...], wh_ref[0], preferred_element_type=jnp.float32)
    h_ref[...] = jnp.maximum(hi + bh_ref[0], 0.0).astype(h_ref.dtype)

    # Decoder at the last layer step.
    @pl.when(l == last)
    def _():
        y = jnp.dot(h_ref[...], wdec_ref[...],
                    preferred_element_type=jnp.float32)
        o_ref[...] = (y + bdec_ref[...]).astype(o_ref.dtype)


# ---------------------------------------------------------------------------
# Parameter init (PyTorch-Linear-like) and one-time prep (transpose + pad).
# ---------------------------------------------------------------------------
def init_cnn_params(key, input_size, frame_size, hidden_size, output_size,
                    n_layers=1, dtype=jnp.float32):
    def linear_init(k, out_f, in_f):
        kw, kb = jax.random.split(k)
        bound = 1.0 / jnp.sqrt(jnp.asarray(in_f, dtype))
        w = jax.random.uniform(kw, (out_f, in_f), dtype, -bound, bound)
        b = jax.random.uniform(kb, (out_f,), dtype, -bound, bound)
        return w, b

    keys = jax.random.split(key, 2 + n_layers)
    return {
        "encoder": linear_init(keys[0], hidden_size, input_size * frame_size),
        "Ws": [linear_init(keys[1 + i], hidden_size, hidden_size)
               for i in range(n_layers)],
        "decoder": linear_init(keys[1 + n_layers], output_size, hidden_size),
    }


def prepare_params(params, batch_size, *, compute_dtype=jnp.float32,
                   lane_multiple=128, max_batch_tile=256):
    """One-time glue: transpose PyTorch (out,in) weights to (in,out), zero-pad
    all dims to lane/sublane-dense shapes, stack hidden layers, pick tile plan."""
    w_enc, b_enc = params["encoder"]
    w_dec, b_dec = params["decoder"]
    H, K = w_enc.shape
    N = w_dec.shape[0]
    n_layers = len(params["Ws"])
    assert n_layers >= 1, "grid over the layer axis requires n_layers >= 1"

    # NOTE(v6e/v7x + bf16): consider lane_multiple=256 to keep the 2x256x256 MXU full.
    Kp = _round_up(K, lane_multiple)
    Hp = _round_up(H, lane_multiple)
    Np = _round_up(N, lane_multiple)

    Bp = max(_round_up(batch_size, 8), 8)
    if Bp > max_batch_tile:
        Bt = max_batch_tile
        Bp = _round_up(Bp, Bt)
    else:
        Bt = Bp

    def pad_wt(w, in_p, out_p):
        wt = w.T.astype(compute_dtype)                       # (in, out)
        return (jnp.zeros((in_p, out_p), compute_dtype)
                .at[:wt.shape[0], :wt.shape[1]].set(wt))

    def pad_b(b, out_p):
        return (jnp.zeros((1, out_p), jnp.float32)
                .at[0, :b.shape[0]].set(b.astype(jnp.float32)))

    prepared = {
        "w_enc": pad_wt(w_enc, Kp, Hp),
        "b_enc": pad_b(b_enc, Hp),
        "w_hid": jnp.stack([pad_wt(w, Hp, Hp) for (w, _) in params["Ws"]]),
        "b_hid": jnp.stack([pad_b(b, Hp) for (_, b) in params["Ws"]]),
        "w_dec": pad_wt(w_dec, Hp, Np),
        "b_dec": pad_b(b_dec, Np),
        "Bp": Bp, "Bt": Bt, "Kp": Kp, "Hp": Hp, "Np": Np,
        "in_features": K, "output_size": N, "n_layers": n_layers,
        "compute_dtype": compute_dtype,
    }
    return jax.tree_util.tree_map(
        lambda a: jax.block_until_ready(a) if isinstance(a, jax.Array) else a,
        prepared)


# ---------------------------------------------------------------------------
# Forward pass (single fused, layer-streaming pallas_call).
# ---------------------------------------------------------------------------
def cnn_forward(prepared, x):
    p = prepared
    B = x.shape[0]
    Bp, Bt, Kp, Hp, Np = p["Bp"], p["Bt"], p["Kp"], p["Hp"], p["Np"]
    L = p["n_layers"]
    cdt = p["compute_dtype"]
    isz = jnp.dtype(cdt).itemsize

    # input.view(batch, -1), then zero-pad to the lane/sublane-dense block.
    xf = x.reshape(B, -1).astype(cdt)
    xp = jnp.zeros((Bp, Kp), cdt).at[:B, :p["in_features"]].set(xf)

    num_m = Bp // Bt

    # Advisory cost for XLA's scheduler around the custom call.
    flops = 2 * Bp * (Kp * Hp + L * Hp * Hp + Hp * Np)
    bytes_accessed = ((Bp * Kp + Kp * Hp + L * Hp * Hp + Hp * Np) * isz
                      + (Hp + L * Hp + Np) * 4 + Bp * Np * 4)

    # Scoped-VMEM budget: double-buffer every tile + scratch, 1.5x + headroom.
    vmem_bytes = 2 * (Bt * Kp * isz + Kp * Hp * isz + Hp * 4
                      + Hp * Hp * isz + Hp * 4
                      + Hp * Np * isz + Np * 4
                      + Bt * Np * 4) + Bt * Hp * isz
    vmem_limit = min(max(int(vmem_bytes * 1.5) + (2 << 20), 4 << 20), 100 << 20)

    out_p = pl.pallas_call(
        _mlp_layer_kernel,
        out_shape=jax.ShapeDtypeStruct((Bp, Np), jnp.float32),
        grid=(num_m, L),
        in_specs=[
            pl.BlockSpec((Bt, Kp), lambda m, l: (m, 0)),       # x (per batch tile)
            pl.BlockSpec((Kp, Hp), lambda m, l: (0, 0)),       # encoder W (resident)
            pl.BlockSpec((1, Hp), lambda m, l: (0, 0)),        # encoder b
            pl.BlockSpec((1, Hp, Hp), lambda m, l: (l, 0, 0)),  # hidden W (streamed)
            pl.BlockSpec((1, 1, Hp), lambda m, l: (l, 0, 0)),   # hidden b (streamed)
            pl.BlockSpec((Hp, Np), lambda m, l: (0, 0)),       # decoder W (resident)
            pl.BlockSpec((1, Np), lambda m, l: (0, 0)),        # decoder b
        ],
        out_specs=pl.BlockSpec((Bt, Np), lambda m, l: (m, 0)),
        scratch_shapes=[pltpu.VMEM((Bt, Hp), cdt)],            # persistent activation
        compiler_params=pltpu.CompilerParams(
            dimension_semantics=("parallel", "arbitrary"),
            vmem_limit_bytes=vmem_limit),
        cost_estimate=pl.CostEstimate(flops=flops, transcendentals=0,
                                      bytes_accessed=bytes_accessed),
    )(xp, p["w_enc"], p["b_enc"], p["w_hid"], p["b_hid"],
      p["w_dec"], p["b_dec"])

    return out_p[:B, :p["output_size"]]


# ---------------------------------------------------------------------------
# Pure-JAX reference (operates on the raw PyTorch-style params).
# ---------------------------------------------------------------------------
def cnn_forward_ref(params, x, batch_size):
    h = x.reshape(batch_size, -1)
    w, b = params["encoder"]
    h = jnp.maximum(h @ w.T + b, 0.0)
    for (w, b) in params["Ws"]:
        h = jnp.maximum(h @ w.T + b, 0.0)
    w, b = params["decoder"]
    return h @ w.T + b


if __name__ == "__main__":
    # Small shapes consistent with the module's forward:
    batch_size = 2
    input_size = 4      # features per frame
    frame_size = 8      # frames -> encoder input dim = 32
    hidden_size = 32
    output_size = 8
    n_layers = 2

    key = jax.random.PRNGKey(0)
    kp, kx, kx2 = jax.random.split(key, 3)

    params = init_cnn_params(kp, input_size, frame_size, hidden_size,
                             output_size, n_layers=n_layers)

    # x: (batch, frame_size, input_size); forward flattens it to (batch, -1)
    x = jax.random.normal(kx, (batch_size, frame_size, input_size),
                          dtype=jnp.float32)

    # --- 1) default f32 path, single batch tile -----------------------------
    prepared = prepare_params(params, batch_size, compute_dtype=jnp.float32)
    out = jax.block_until_ready(cnn_forward(prepared, x))
    ref = cnn_forward_ref(params, x, batch_size)
    assert out.shape == (batch_size, output_size)
    assert jnp.allclose(out, ref, atol=1e-5, rtol=1e-5), "mismatch vs reference (f32)"

    # --- 2) batch-tiled path (grid over M, "parallel" axis) ------------------
    big_batch = 272   # -> Bp=384, Bt=128, 3 batch tiles
    xb = jax.random.normal(kx2, (big_batch, frame_size, input_size),
                           dtype=jnp.float32)
    prepared_b = prepare_params(params, big_batch, compute_dtype=jnp.float32,
                                max_batch_tile=128)
    out_b = jax.block_until_ready(cnn_forward(prepared_b, xb))
    ref_b = cnn_forward_ref(params, xb, big_batch)
    assert out_b.shape == (big_batch, output_size)
    assert jnp.allclose(out_b, ref_b, atol=1e-5, rtol=1e-5), "mismatch vs reference (tiled)"

    # --- 3) bf16 weight-streaming path (production config), loose tolerance --
    prepared_bf16 = prepare_params(params, batch_size, compute_dtype=jnp.bfloat16)
    out_bf16 = jax.block_until_ready(cnn_forward(prepared_bf16, x))
    assert out_bf16.shape == (batch_size, output_size)
    assert jnp.allclose(out_bf16, ref, atol=1e-1, rtol=1e-1), "mismatch vs reference (bf16)"

    print("KERNEL_OK")
</pallas_src>

<mosaic_0001>
module attributes {stable_mosaic.version = 11 : i64} {
  func.func @_mlp_layer_kernel(%arg0: i32, %arg1: i32, %arg2: memref<8x128xf32, #tpu.memory_space<vmem>>, %arg3: memref<128x128xf32, #tpu.memory_space<vmem>>, %arg4: memref<1x128xf32, #tpu.memory_space<vmem>>, %arg5: memref<1x128x128xf32, #tpu.memory_space<vmem>>, %arg6: memref<1x1x128xf32, #tpu.memory_space<vmem>>, %arg7: memref<128x128xf32, #tpu.memory_space<vmem>>, %arg8: memref<1x128xf32, #tpu.memory_space<vmem>>, %arg9: memref<8x128xf32, #tpu.memory_space<vmem>>, %arg10: memref<8x128xf32, #tpu.memory_space<vmem>>) attributes {dimension_semantics = [#tpu.dimension_semantics<parallel>, #tpu.dimension_semantics<arbitrary>], iteration_bounds = array<i64: 1, 2>, scalar_prefetch = 0 : i64, scratch_operands = 1 : i64, tpu.core_type = #tpu.core_type<tc>, window_params = [{transform_indices = @transform_0, window_bounds = array<i64: 8, 128>}, {pipeline_mode = #tpu.pipeline_mode<synchronous>, transform_indices = @transform_1, window_bounds = array<i64: 128, 128>}, {pipeline_mode = #tpu.pipeline_mode<synchronous>, transform_indices = @transform_2, window_bounds = array<i64: 1, 128>}, {transform_indices = @transform_3, window_bounds = array<i64: 1, 128, 128>}, {transform_indices = @transform_4, window_bounds = array<i64: 1, 1, 128>}, {pipeline_mode = #tpu.pipeline_mode<synchronous>, transform_indices = @transform_5, window_bounds = array<i64: 128, 128>}, {pipeline_mode = #tpu.pipeline_mode<synchronous>, transform_indices = @transform_6, window_bounds = array<i64: 1, 128>}, {transform_indices = @transform_7, window_bounds = array<i64: 8, 128>}]} {
    %c0_i32 = arith.constant 0 : i32
    %0 = arith.cmpi eq, %arg1, %c0_i32 : i32
    %1 = arith.extui %0 : i1 to i32
    %c0_i32_0 = arith.constant 0 : i32
    %2 = arith.cmpi ne, %1, %c0_i32_0 : i32
    scf.if %2 {
      %c0_12 = arith.constant 0 : index
      %c0_13 = arith.constant 0 : index
      %17 = vector.load %arg2[%c0_12, %c0_13] : memref<8x128xf32, #tpu.memory_space<vmem>>, vector<8x128xf32>
      %c0_14 = arith.constant 0 : index
      %c0_15 = arith.constant 0 : index
      %18 = vector.load %arg3[%c0_14, %c0_15] : memref<128x128xf32, #tpu.memory_space<vmem>>, vector<128x128xf32>
      %cst_16 = arith.constant dense<0.000000e+00> : vector<8x128xf32>
      %19 = tpu.matmul %17, %18, %cst_16 {dimension_numbers = #tpu.dot_dimension_numbers<[1], [0], [0], [1], [0, 0, 1, 1], [], []>} : vector<8x128xf32>, vector<128x128xf32>, vector<8x128xf32> -> vector<8x128xf32>
      %c0_17 = arith.constant 0 : index
      %c0_18 = arith.constant 0 : index
      %20 = vector.load %arg4[%c0_17, %c0_18] : memref<1x128xf32, #tpu.memory_space<vmem>>, vector<1x128xf32>
      %21 = vector.broadcast %20 : vector<1x128xf32> to vector<8x128xf32>
      %22 = arith.addf %19, %21 : vector<8x128xf32>
      %cst_19 = arith.constant 0.000000e+00 : f32
      %23 = vector.broadcast %cst_19 : f32 to vector<8x128xf32>
      %24 = arith.maximumf %22, %23 : vector<8x128xf32>
      %c0_20 = arith.constant 0 : index
      %c0_21 = arith.constant 0 : index
      %25 = vector.load %arg10[%c0_20, %c0_21] : memref<8x128xf32, #tpu.memory_space<vmem>>, vector<8x128xf32>
      tpu.vector_store %arg10[%c0_20, %c0_21], %24 {strides = array<i32>} : memref<8x128xf32, #tpu.memory_space<vmem>>, vector<8x128xf32>,
    } else {
    }
    %c0 = arith.constant 0 : index
    %c0_1 = arith.constant 0 : index
    %3 = vector.load %arg10[%c0, %c0_1] : memref<8x128xf32, #tpu.memory_space<vmem>>, vector<8x128xf32>
    %c0_2 = arith.constant 0 : index
    %c0_3 = arith.constant 0 : index
    %c0_4 = arith.constant 0 : index
    %4 = vector.load %arg5[%c0_2, %c0_3, %c0_4] : memref<1x128x128xf32, #tpu.memory_space<vmem>>, vector<1x128x128xf32>
    %5 = vector.shape_cast %4 : vector<1x128x128xf32> to vector<128x128xf32>
    %cst = arith.constant dense<0.000000e+00> : vector<8x128xf32>
    %6 = tpu.matmul %3, %5, %cst {dimension_numbers = #tpu.dot_dimension_numbers<[1], [0], [0], [1], [0, 0, 1, 1], [], []>} : vector<8x128xf32>, vector<128x128xf32>, vector<8x128xf32> -> vector<8x128xf32>
    %c0_5 = arith.constant 0 : index
    %c0_6 = arith.constant 0 : index
    %c0_7 = arith.constant 0 : index
    %7 = vector.load %arg6[%c0_5, %c0_6, %c0_7] : memref<1x1x128xf32, #tpu.memory_space<vmem>>, vector<1x1x128xf32>
    %8 = vector.shape_cast %7 : vector<1x1x128xf32> to vector<1x128xf32>
    %9 = vector.broadcast %8 : vector<1x128xf32> to vector<8x128xf32>
    %10 = arith.addf %6, %9 : vector<8x128xf32>
    %cst_8 = arith.constant 0.000000e+00 : f32
    %11 = vector.broadcast %cst_8 : f32 to vector<8x128xf32>
    %12 = arith.maximumf %10, %11 : vector<8x128xf32>
    %c0_9 = arith.constant 0 : index
    %c0_10 = arith.constant 0 : index
    %13 = vector.load %arg10[%c0_9, %c0_10] : memref<8x128xf32, #tpu.memory_space<vmem>>, vector<8x128xf32>
    tpu.vector_store %arg10[%c0_9, %c0_10], %12 {strides = array<i32>} : memref<8x128xf32, #tpu.memory_space<vmem>>, vector<8x128xf32>,
    %c1_i32 = arith.constant 1 : i32
    %14 = arith.cmpi eq, %arg1, %c1_i32 : i32
    %15 = arith.extui %14 : i1 to i32
    %c0_i32_11 = arith.constant 0 : i32
    %16 = arith.cmpi ne, %15, %c0_i32_11 : i32
    scf.if %16 {
      %c0_12 = arith.constant 0 : index
      %c0_13 = arith.constant 0 : index
      %17 = vector.load %arg10[%c0_12, %c0_13] : memref<8x128xf32, #tpu.memory_space<vmem>>, vector<8x128xf32>
      %c0_14 = arith.constant 0 : index
      %c0_15 = arith.constant 0 : index
      %18 = vector.load %arg7[%c0_14, %c0_15] : memref<128x128xf32, #tpu.memory_space<vmem>>, vector<128x128xf32>
      %cst_16 = arith.constant dense<0.000000e+00> : vector<8x128xf32>
      %19 = tpu.matmul %17, %18, %cst_16 {dimension_numbers = #tpu.dot_dimension_numbers<[1], [0], [0], [1], [0, 0, 1, 1], [], []>} : vector<8x128xf32>, vector<128x128xf32>, vector<8x128xf32> -> vector<8x128xf32>
      %c0_17 = arith.constant 0 : index
      %c0_18 = arith.constant 0 : index
      %20 = vector.load %arg8[%c0_17, %c0_18] : memref<1x128xf32, #tpu.memory_space<vmem>>, vector<1x128xf32>
      %21 = vector.broadcast %20 : vector<1x128xf32> to vector<8x128xf32>
      %22 = arith.addf %19, %21 : vector<8x128xf32>
      %c0_19 = arith.constant 0 : index
      %c0_20 = arith.constant 0 : index
      %23 = vector.load %arg9[%c0_19, %c0_20] : memref<8x128xf32, #tpu.memory_space<vmem>>, vector<8x128xf32>
      tpu.vector_store %arg9[%c0_19, %c0_20], %22 {strides = array<i32>} : memref<8x128xf32, #tpu.memory_space<vmem>>, vector<8x128xf32>,
    } else {
    }
    return
  }
  func.func @transform_0(%arg0: i32, %arg1: i32) -> (i32, i32) {
    %c0_i32 = arith.constant 0 : i32
    %c0_i32_0 = arith.constant 0 : i32
    return %arg0, %c0_i32 : i32, i32
  }
  func.func @transform_1(%arg0: i32, %arg1: i32) -> (i32, i32) {
    %c0_i32 = arith.constant 0 : i32
    %c0_i32_0 = arith.constant 0 : i32
    %c0_i32_1 = arith.constant 0 : i32
    return %c0_i32, %c0_i32_0 : i32, i32
  }
  func.func @transform_2(%arg0: i32, %arg1: i32) -> (i32, i32) {
    %c0_i32 = arith.constant 0 : i32
    %c0_i32_0 = arith.constant 0 : i32
    %c0_i32_1 = arith.constant 0 : i32
    return %c0_i32, %c0_i32_0 : i32, i32
  }
  func.func @transform_3(%arg0: i32, %arg1: i32) -> (i32, i32, i32) {
    %c0_i32 = arith.constant 0 : i32
    %c0_i32_0 = arith.constant 0 : i32
    %c0_i32_1 = arith.constant 0 : i32
    return %arg1, %c0_i32, %c0_i32_0 : i32, i32, i32
  }
  func.func @transform_4(%arg0: i32, %arg1: i32) -> (i32, i32, i32) {
    %c0_i32 = arith.constant 0 : i32
    %c0_i32_0 = arith.constant 0 : i32
    %c0_i32_1 = arith.constant 0 : i32
    return %arg1, %c0_i32, %c0_i32_0 : i32, i32, i32
  }
  func.func @transform_5(%arg0: i32, %arg1: i32) -> (i32, i32) {
    %c0_i32 = arith.constant 0 : i32
    %c0_i32_0 = arith.constant 0 : i32
    %c0_i32_1 = arith.constant 0 : i32
    return %c0_i32, %c0_i32_0 : i32, i32
  }
  func.func @transform_6(%arg0: i32, %arg1: i32) -> (i32, i32) {
    %c0_i32 = arith.constant 0 : i32
    %c0_i32_0 = arith.constant 0 : i32
    %c0_i32_1 = arith.constant 0 : i32
    return %c0_i32, %c0_i32_0 : i32, i32
  }
  func.func @transform_7(%arg0: i32, %arg1: i32) -> (i32, i32) {
    %c0_i32 = arith.constant 0 : i32
    %c0_i32_0 = arith.constant 0 : i32
    return %arg0, %c0_i32 : i32, i32
  }
}

</mosaic_0001>

<llo_original>
// kernel: tpu_custom_call.1
$region0: #{tpu_custom_call.1}
  #allocation0 [shape = 'u32[]', space=smem, size = 0x4, offset = 0x4, fixed_abs, tag = 'smem constant byte address 0x4 - core index']
  #allocation1 [shape = 'u32[144,128]{1,0:T(1,128)}', space=vmem, size = 0x12000, scoped, tag = 'internal scratch']
  #allocation2 [shape = 'f32[8,128]{1,0:T(8,128)}', space=vmem, size = 0x1000, scoped, tag = 'scratch operand']
  %s0 = inlined_call_operand.hbm [shape: f32[8,128], index: 0, kind: input, shape index: {}]
  %s1 = inlined_call_operand.hbm [shape: f32[128,128], index: 1, kind: input, shape index: {}]
  %s2 = inlined_call_operand.vmem [shape: f32[1,128], index: 2, kind: input, shape index: {}]
  %s3 = inlined_call_operand.hbm [shape: f32[2,128,128], index: 3, kind: input, shape index: {}]
  %s4 = inlined_call_operand.vmem [shape: f32[2,1,128], index: 4, kind: input, shape index: {}]
  %s5 = inlined_call_operand.hbm [shape: f32[128,128], index: 5, kind: input, shape index: {}]
  %s6 = inlined_call_operand.vmem [shape: f32[1,128], index: 6, kind: input, shape index: {}]
  %s7 = inlined_call_operand.hbm [shape: f32[8,128], index: 7, kind: output, shape index: {}]
  %s8 = sld [smem:[#allocation0]]
  $region85: #{tpu_custom_call.1} parent=0
    _
  %s10 = ssub.s32 1, %s8
  %s11 = scalar_select 0, %s10, %s8
  $region1: #{tpu_custom_call.1} parent=0
    #allocation3 [shape = 'u8[4096]{0}', space=vmem, size = 0x1000, scoped, tag = 'input window, operand 0, single buffered']
    #allocation4 [shape = 's32[2]{0}', space=sflag, size = 0x8, scoped, tag = 'scoped memory for tpu_custom_call.1']
    #allocation5 [shape = 's32[2]{0}', space=sflag, size = 0x8, scoped, tag = 'scoped memory for tpu_custom_call.1']
    #allocation6 [shape = 'u8[65536]{0}', space=vmem, size = 0x10000, scoped, tag = 'input window, operand 1, single buffered']
    #allocation7 [shape = 's32[1]{0}', space=sflag, size = 0x4, scoped, tag = 'scoped memory for tpu_custom_call.1']
    #allocation8 [shape = 'u8[131072]{0}', space=vmem, size = 0x20000, scoped, tag = 'input window, operand 3']
    #allocation9 [shape = 'u8[65536]{0}', space=vmem, size = 0x10000, scoped, tag = 'input window, operand 5, single buffered']
    #allocation10 [shape = 'u8[4096]{0}', space=vmem, size = 0x1000, scoped, tag = 'output window, operand 0, single buffered']
    %12 = vsyncpa [#allocation4], 0
    %13 = vsyncpa [#allocation7], 0
    %14 = vsyncpa [#allocation5], 0
    loop: start=0, step=1, limit=4
    $region2: #{tpu_custom_call.1} parent=1 // loop_pre_header
      _
    $region3: #{tpu_custom_call.1} parent=1 // loop_header
      %s16 = sphi 0, %s20
      %p17 = scmp.ge.s32.totalorder %s16, 4
      %s23 = sphi 0, %s35
      %s24 = sphi 0, %s31
      %s25 = sphi 0, %s23
      %s26 = sphi 0, %s24
      %s27 = sphi 0, %s25
      %s28 = sphi 0, %s26
      %s38 = sphi 0, %s40
      %s41 = sphi 0, %s38
      %s42 = sphi 0, %s41
      %s58 = sphi 0, %s42
      %s62 = sphi 0, %s62
      %s64 = sphi 0, %s62
      %s65 = sphi 0, %s64
      %s79 = sphi 0, %s65
      %s83 = sphi 0, %s83
      %s85 = sphi 0, %s83
      %s86 = sphi 0, %s85
      %s100 = sphi 0, %s86
      %s106 = sphi 0, %s108
      %s109 = sphi 0, %s106
      %s110 = sphi 0, %s109
      %s126 = sphi 0, %s110
      %s132 = sphi 0, %s134
      %s135 = sphi 0, %s132
      %s136 = sphi 0, %s135
      %s152 = sphi 0, %s136
      %s156 = sphi 0, %s156
      %s158 = sphi 0, %s156
      %s159 = sphi 0, %s158
      %s173 = sphi 0, %s159
      %s177 = sphi 0, %s177
      %s179 = sphi 0, %s177
      %s180 = sphi 0, %s179
      %s194 = sphi 0, %s180
      %s200 = sphi 0, %s202
      %s203 = sphi 0, %s200
      %s204 = sphi 0, %s203
      %s220 = sphi 0, %s204
    $region4: #{tpu_custom_call.1} parent=1 // loop_header_branch
      %19 = sbr.rel (%p17) target = $region8
    $region5: #{tpu_custom_call.1} parent=1 // loop_body
      %s21 = ssub.s32 %s16, 1
      %s22 = ssub.s32 %s16, 2
      %s29 = sadd.s32 1, %s24
      %p30 = scmp.ge.s32.totalorder %s29, 2
      %s31 = scalar_select %p30, 0, %s29
      %s32 = sadd.s32 1, %s23
      %s33 = scalar_select %p30, %s32, %s23
      %p34 = scmp.ge.s32.totalorder %s33, 1
      %s35 = scalar_select %p34, 0, %s33
      %s36 = ssub.s32 %s23, %s35
      %p37 = scmp.eq.s32.totalorder %s36, 0
      %s39 = sadd.s32 %s38, 1
      %s40 = scalar_select %p37, %s38, %s39
      %p43 = pneg %p37
      %p44 = scmp.eq.s32.totalorder %s16, 1
      %p45 = por %p43, %p44
      %p46 = scmp.ne.s32.totalorder %s38, %s41
      %p47 = scmp.eq.s32.totalorder %s16, 0
      %p48 = por %p46, %p47
      %p49 = scmp.ne.s32.totalorder %s38, %s41
      %p50 = scmp.eq.s32.totalorder %s21, 1
      %p51 = por %p49, %p50
      %p52 = scmp.ne.s32.totalorder %s41, %s42
      %p53 = scmp.eq.s32.totalorder %s21, 0
      %p54 = por %p52, %p53
      %p55 = scmp.ne.s32.totalorder %s41, %s42
      %p56 = scmp.eq.s32.totalorder %s22, 1
      %p57 = por %p55, %p56
      %p59 = scmp.ne.s32.totalorder %s42, %s58
      %p60 = scmp.eq.s32.totalorder %s22, 0
      %p61 = por %p59, %p60
      %s63 = sadd.s32 %s62, 1
      %p66 = scmp.eq.s32.totalorder %s16, 1
      %p67 = scmp.ne.s32.totalorder %s62, %s64
      %p68 = scmp.eq.s32.totalorder %s16, 0
      %p69 = por %p67, %p68
      %p70 = scmp.ne.s32.totalorder %s62, %s64
      %p71 = scmp.eq.s32.totalorder %s21, 1
      %p72 = por %p70, %p71
      %p73 = scmp.ne.s32.totalorder %s64, %s65
      %p74 = scmp.eq.s32.totalorder %s21, 0
      %p75 = por %p73, %p74
      %p76 = scmp.ne.s32.totalorder %s64, %s65
      %p77 = scmp.eq.s32.totalorder %s22, 1
      %p78 = por %p76, %p77
      %p80 = scmp.ne.s32.totalorder %s65, %s79
      %p81 = scmp.eq.s32.totalorder %s22, 0
      %p82 = por %p80, %p81
      %s84 = sadd.s32 %s83, 1
      %p87 = scmp.eq.s32.totalorder %s16, 1
      %p88 = scmp.ne.s32.totalorder %s83, %s85
      %p89 = scmp.eq.s32.totalorder %s16, 0
      %p90 = por %p88, %p89
      %p91 = scmp.ne.s32.totalorder %s83, %s85
      %p92 = scmp.eq.s32.totalorder %s21, 1
      %p93 = por %p91, %p92
      %p94 = scmp.ne.s32.totalorder %s85, %s86
      %p95 = scmp.eq.s32.totalorder %s21, 0
      %p96 = por %p94, %p95
      %p97 = scmp.ne.s32.totalorder %s85, %s86
      %p98 = scmp.eq.s32.totalorder %s22, 1
      %p99 = por %p97, %p98
      %p101 = scmp.ne.s32.totalorder %s86, %s100
      %p102 = scmp.eq.s32.totalorder %s22, 0
      %p103 = por %p101, %p102
      %s104 = ssub.s32 %s24, %s31
      %p105 = scmp.eq.s32.totalorder %s104, 0
      %s107 = sadd.s32 %s106, 1
      %s108 = scalar_select %p105, %s106, %s107
      %p111 = pneg %p105
      %p112 = scmp.eq.s32.totalorder %s16, 1
      %p113 = por %p111, %p112
      %p114 = scmp.ne.s32.totalorder %s106, %s109
      %p115 = scmp.eq.s32.totalorder %s16, 0
      %p116 = por %p114, %p115
      %p117 = scmp.ne.s32.totalorder %s106, %s109
      %p118 = scmp.eq.s32.totalorder %s21, 1
      %p119 = por %p117, %p118
      %p120 = scmp.ne.s32.totalorder %s109, %s110
      %p121 = scmp.eq.s32.totalorder %s21, 0
      %p122 = por %p120, %p121
      %p123 = scmp.ne.s32.totalorder %s109, %s110
      %p124 = scmp.eq.s32.totalorder %s22, 1
      %p125 = por %p123, %p124
      %p127 = scmp.ne.s32.totalorder %s110, %s126
      %p128 = scmp.eq.s32.totalorder %s22, 0
      %p129 = por %p127, %p128
      %s130 = ssub.s32 %s24, %s31
      %p131 = scmp.eq.s32.totalorder %s130, 0
      %s133 = sadd.s32 %s132, 1
      %s134 = scalar_select %p131, %s132, %s133
      %p137 = pneg %p131
      %p138 = scmp.eq.s32.totalorder %s16, 1
      %p139 = por %p137, %p138
      %p140 = scmp.ne.s32.totalorder %s132, %s135
      %p141 = scmp.eq.s32.totalorder %s16, 0
      %p142 = por %p140, %p141
      %p143 = scmp.ne.s32.totalorder %s132, %s135
      %p144 = scmp.eq.s32.totalorder %s21, 1
      %p145 = por %p143, %p144
      %p146 = scmp.ne.s32.totalorder %s135, %s136
      %p147 = scmp.eq.s32.totalorder %s21, 0
      %p148 = por %p146, %p147
      %p149 = scmp.ne.s32.totalorder %s135, %s136
      %p150 = scmp.eq.s32.totalorder %s22, 1
      %p151 = por %p149, %p150
      %p153 = scmp.ne.s32.totalorder %s136, %s152
      %p154 = scmp.eq.s32.totalorder %s22, 0
      %p155 = por %p153, %p154
      %s157 = sadd.s32 %s156, 1
      %p160 = scmp.eq.s32.totalorder %s16, 1
      %p161 = scmp.ne.s32.totalorder %s156, %s158
      %p162 = scmp.eq.s32.totalorder %s16, 0
      %p163 = por %p161, %p162
      %p164 = scmp.ne.s32.totalorder %s156, %s158
      %p165 = scmp.eq.s32.totalorder %s21, 1
      %p166 = por %p164, %p165
      %p167 = scmp.ne.s32.totalorder %s158, %s159
      %p168 = scmp.eq.s32.totalorder %s21, 0
      %p169 = por %p167, %p168
      %p170 = scmp.ne.s32.totalorder %s158, %s159
      %p171 = scmp.eq.s32.totalorder %s22, 1
      %p172 = por %p170, %p171
      %p174 = scmp.ne.s32.totalorder %s159, %s173
      %p175 = scmp.eq.s32.totalorder %s22, 0
      %p176 = por %p174, %p175
      %s178 = sadd.s32 %s177, 1
      %p181 = scmp.eq.s32.totalorder %s16, 1
      %p182 = scmp.ne.s32.totalorder %s177, %s179
      %p183 = scmp.eq.s32.totalorder %s16, 0
      %p184 = por %p182, %p183
      %p185 = scmp.ne.s32.totalorder %s177, %s179
      %p186 = scmp.eq.s32.totalorder %s21, 1
      %p187 = por %p185, %p186
      %p188 = scmp.ne.s32.totalorder %s179, %s180
      %p189 = scmp.eq.s32.totalorder %s21, 0
      %p190 = por %p188, %p189
      %p191 = scmp.ne.s32.totalorder %s179, %s180
      %p192 = scmp.eq.s32.totalorder %s22, 1
      %p193 = por %p191, %p192
      %p195 = scmp.ne.s32.totalorder %s180, %s194
      %p196 = scmp.eq.s32.totalorder %s22, 0
      %p197 = por %p195, %p196
      %s198 = ssub.s32 %s23, %s35
      %p199 = scmp.eq.s32.totalorder %s198, 0
      %s201 = sadd.s32 %s200, 1
      %s202 = scalar_select %p199, %s200, %s201
      %p205 = pneg %p199
      %p206 = scmp.eq.s32.totalorder %s16, 1
      %p207 = por %p205, %p206
      %p208 = scmp.ne.s32.totalorder %s200, %s203
      %p209 = scmp.eq.s32.totalorder %s16, 0
      %p210 = por %p208, %p209
      %p211 = scmp.ne.s32.totalorder %s200, %s203
      %p212 = scmp.eq.s32.totalorder %s21, 1
      %p213 = por %p211, %p212
      %p214 = scmp.ne.s32.totalorder %s203, %s204
      %p215 = scmp.eq.s32.totalorder %s21, 0
      %p216 = por %p214, %p215
      %p217 = scmp.ne.s32.totalorder %s203, %s204
      %p218 = scmp.eq.s32.totalorder %s22, 1
      %p219 = por %p217, %p218
      %p221 = scmp.ne.s32.totalorder %s204, %s220
      %p222 = scmp.eq.s32.totalorder %s22, 0
      %p223 = por %p221, %p222
      %p224 = scmp.le.s32.totalorder 1, %s16
      %p225 = scmp.lt.s32.totalorder %s16, 3
      %p226 = pnand %p224, %p225
      %p227 = pneg %p226
      // Predicated region
      $region9: #{tpu_custom_call.1} parent=5 // pred_check
        _
      $region10: #{tpu_custom_call.1} parent=5 // pred_check_branch
        %229 = sbr.rel (%p226) target = $region12
      $region11: #{tpu_custom_call.1} parent=5 // pred_region
        %s230 = ssub.s32 %s16, 1
        // Predicated region
        $region13: #{tpu_custom_call.1} parent=11 // pred_check
          %p231 = pneg %p54
        $region14: #{tpu_custom_call.1} parent=11 // pred_check_branch
          %233 = sbr.rel (%p231) target = $region16
        $region15: #{tpu_custom_call.1} parent=11 // pred_region
          %s235 = ssub.s32 128, 128
          %236 = vsyncadd [#allocation4], %s235
          %s237 = smul.addr %s25, 128
          %s238 = scalar_lea.hbm %s0, %s237
          %s240 = sshll.u32 [#allocation3], 4
          %s241 = int_to_ptr.vmem [resolvable:$true] %s240
          %243 = dma.hbm_to_vmem [thread:$0]  %s238, 128, %s241, [#allocation4]
        $region16: #{tpu_custom_call.1} parent=11 // pred_fallthru
          _
        // Predicated region
        $region17: #{tpu_custom_call.1} parent=11 // pred_check
          %p244 = pneg %p75
        $region18: #{tpu_custom_call.1} parent=11 // pred_check_branch
          %246 = sbr.rel (%p244) target = $region20
        $region19: #{tpu_custom_call.1} parent=11 // pred_region
          %s248 = ssub.s32 2048, 2048
          %249 = vsyncadd [#allocation7], %s248
          %s250 = sshll.u32 [#allocation6], 4
          %s251 = int_to_ptr.vmem [resolvable:$true] %s250
          %256 = dma.hbm_to_vmem [thread:$0]  %s1, 2048, %s251, [#allocation7], 128, 128, 8
        $region20: #{tpu_custom_call.1} parent=11 // pred_fallthru
          _
        // Predicated region
        $region21: #{tpu_custom_call.1} parent=11 // pred_check
          %p257 = pneg %p96
        $region22: #{tpu_custom_call.1} parent=11 // pred_check_branch
          %259 = sbr.rel (%p257) target = $region24
        $region23: #{tpu_custom_call.1} parent=11 // pred_region
          _
        $region24: #{tpu_custom_call.1} parent=11 // pred_fallthru
          _
        // Predicated region
        $region25: #{tpu_custom_call.1} parent=11 // pred_check
          %p260 = pneg %p169
        $region26: #{tpu_custom_call.1} parent=11 // pred_check_branch
          %262 = sbr.rel (%p260) target = $region28
        $region27: #{tpu_custom_call.1} parent=11 // pred_region
          %s264 = ssub.s32 2048, 2048
          %265 = vsyncadd [#allocation7], %s264
          %s266 = sshll.u32 [#allocation9], 4
          %s267 = int_to_ptr.vmem [resolvable:$true] %s266
          %272 = dma.hbm_to_vmem [thread:$0]  %s5, 2048, %s267, [#allocation7], 128, 128, 8
        $region28: #{tpu_custom_call.1} parent=11 // pred_fallthru
          _
        // Predicated region
        $region29: #{tpu_custom_call.1} parent=11 // pred_check
          %p273 = pneg %p190
        $region30: #{tpu_custom_call.1} parent=11 // pred_check_branch
          %275 = sbr.rel (%p273) target = $region32
        $region31: #{tpu_custom_call.1} parent=11 // pred_region
          _
        $region32: #{tpu_custom_call.1} parent=11 // pred_fallthru
          _
      $region12: #{tpu_custom_call.1} parent=5 // pred_fallthru
        _
      %p276 = scmp.lt.s32.totalorder %s16, 2
      // Predicated region
      $region33: #{tpu_custom_call.1} parent=5 // pred_check
        %p277 = pneg %p276
      $region34: #{tpu_custom_call.1} parent=5 // pred_check_branch
        %279 = sbr.rel (%p277) target = $region36
      $region35: #{tpu_custom_call.1} parent=5 // pred_region
        // Predicated region
        $region37: #{tpu_custom_call.1} parent=35 // pred_check
          %p280 = pneg %p116
        $region38: #{tpu_custom_call.1} parent=35 // pred_check_branch
          %282 = sbr.rel (%p280) target = $region40
        $region39: #{tpu_custom_call.1} parent=35 // pred_region
          %s283 = sand.u32 %s16, 1
          %s284 = scalar_lea.sflag [#allocation4], %s283
          %s285 = sand.u32 %s106, 1
          %s286 = smul.addr %s285, 128
          %s287 = scalar_lea.vmem [#allocation8], %s286
          %s289 = ssub.s32 2048, 2048
          %290 = vsyncadd %s284, %s289
          %s291 = smul.addr %s24, 16
          %s292 = smul.addr %s291, 128
          %s293 = scalar_lea.hbm %s3, %s292
          %s294 = sshll.u32 %s287, 4
          %s295 = int_to_ptr.vmem [resolvable:$true] %s294
          %300 = dma.hbm_to_vmem [thread:$0]  %s293, 2048, %s295, %s284, 128, 128, 8
        $region40: #{tpu_custom_call.1} parent=35 // pred_fallthru
          _
        // Predicated region
        $region41: #{tpu_custom_call.1} parent=35 // pred_check
          %p301 = pneg %p142
        $region42: #{tpu_custom_call.1} parent=35 // pred_check_branch
          %303 = sbr.rel (%p301) target = $region44
        $region43: #{tpu_custom_call.1} parent=35 // pred_region
          %p304 = scmp.lt.s32.totalorder %s24, 1
          %s305 = scalar_select %p304, %s24, 1
          %s306 = scalar_lea.vmem %s4, %s305
        $region44: #{tpu_custom_call.1} parent=35 // pred_fallthru
          _
      $region36: #{tpu_custom_call.1} parent=5 // pred_fallthru
        _
      %p307 = scmp.le.s32.totalorder 1, %s16
      %p308 = scmp.lt.s32.totalorder %s16, 3
      %p309 = pnand %p307, %p308
      %p310 = pneg %p309
      // Predicated region
      $region45: #{tpu_custom_call.1} parent=5 // pred_check
        _
      $region46: #{tpu_custom_call.1} parent=5 // pred_check_branch
        %312 = sbr.rel (%p309) target = $region48
      $region47: #{tpu_custom_call.1} parent=5 // pred_region
        %s313 = ssub.s32 %s16, 1
        // Predicated region
        $region49: #{tpu_custom_call.1} parent=47 // pred_check
          %p314 = pneg %p54
        $region50: #{tpu_custom_call.1} parent=47 // pred_check_branch
          %316 = sbr.rel (%p314) target = $region52
        $region51: #{tpu_custom_call.1} parent=47 // pred_region
          %317 = dma.done [#allocation4], 128
        $region52: #{tpu_custom_call.1} parent=47 // pred_fallthru
          _
        // Predicated region
        $region53: #{tpu_custom_call.1} parent=47 // pred_check
          %p318 = pneg %p75
        $region54: #{tpu_custom_call.1} parent=47 // pred_check_branch
          %320 = sbr.rel (%p318) target = $region56
        $region55: #{tpu_custom_call.1} parent=47 // pred_region
          %321 = dma.done [#allocation7], 2048
        $region56: #{tpu_custom_call.1} parent=47 // pred_fallthru
          _
        %s322 = sand.u32 %s21, 1
        %s323 = scalar_lea.sflag [#allocation4], %s322
        %s324 = sand.u32 %s109, 1
        %s325 = smul.addr %s324, 128
        %s326 = scalar_lea.vmem [#allocation8], %s325
        // Predicated region
        $region57: #{tpu_custom_call.1} parent=47 // pred_check
          %p327 = pneg %p122
        $region58: #{tpu_custom_call.1} parent=47 // pred_check_branch
          %329 = sbr.rel (%p327) target = $region60
        $region59: #{tpu_custom_call.1} parent=47 // pred_region
          %330 = dma.done %s323, 2048
        $region60: #{tpu_custom_call.1} parent=47 // pred_fallthru
          _
        // Predicated region
        $region61: #{tpu_custom_call.1} parent=47 // pred_check
          %p331 = pneg %p169
        $region62: #{tpu_custom_call.1} parent=47 // pred_check_branch
          %333 = sbr.rel (%p331) target = $region64
        $region63: #{tpu_custom_call.1} parent=47 // pred_region
          %334 = dma.done [#allocation7], 2048
        $region64: #{tpu_custom_call.1} parent=47 // pred_fallthru
          _
        %p335 = pneg %p54
        %p336 = pneg %p51
        %p337 = pneg %p75
        %p338 = pneg %p72
        %p339 = pneg %p96
        %p340 = pneg %p93
        %s341 = sand.u32 %s21, 1
        %s342 = scalar_lea.sflag [#allocation4], %s341
        %s343 = sand.u32 %s109, 1
        %s344 = smul.addr %s343, 128
        %s345 = scalar_lea.vmem [#allocation8], %s344
        %p346 = pneg %p122
        %p347 = pneg %p119
        %p348 = scmp.lt.s32.totalorder %s26, 1
        %s349 = scalar_select %p348, %s26, 1
        %s350 = scalar_lea.vmem %s4, %s349
        %p351 = pneg %p148
        %p352 = pneg %p145
        %p353 = pneg %p169
        %p354 = pneg %p166
        %p355 = pneg %p190
        %p356 = pneg %p187
        %p357 = pneg %p216
        %p358 = pneg %p213
        %p359 = scmp.lt.s32.totalorder %s26, 1
        %s360 = scalar_select %p359, %s26, 1
        %s361 = scalar_lea.vmem %s4, %s360
        %p362 = scmp.eq.s32.totalorder %s26, 0
        // Predicated region
        $region65: #{tpu_custom_call.1} parent=47 // pred_check
          %p363 = pneg %p362
        $region66: #{tpu_custom_call.1} parent=47 // pred_check_branch
          %365 = sbr.rel (%p363) target = $region68
        $region67: #{tpu_custom_call.1} parent=47 // pred_region
          %v366 = vld [vmem:[#allocation3] sm:$0xff]
          %v367 = vld [vmem:[#allocation6] sm:$0xff]
          %v368 = vld [vmem:[#allocation6 + $0x8] sm:$0xff]
          %v369 = vld [vmem:[#allocation6 + $0x10] sm:$0xff]
          %v370 = vld [vmem:[#allocation6 + $0x18] sm:$0xff]
          %v371 = vld [vmem:[#allocation6 + $0x20] sm:$0xff]
          %v372 = vld [vmem:[#allocation6 + $0x28] sm:$0xff]
          %v373 = vld [vmem:[#allocation6 + $0x30] sm:$0xff]
          %v374 = vld [vmem:[#allocation6 + $0x38] sm:$0xff]
          %v375 = vld [vmem:[#allocation6 + $0x40] sm:$0xff]
          %v376 = vld [vmem:[#allocation6 + $0x48] sm:$0xff]
          %v377 = vld [vmem:[#allocation6 + $0x50] sm:$0xff]
          %v378 = vld [vmem:[#allocation6 + $0x58] sm:$0xff]
          %v379 = vld [vmem:[#allocation6 + $0x60] sm:$0xff]
          %v380 = vld [vmem:[#allocation6 + $0x68] sm:$0xff]
          %v381 = vld [vmem:[#allocation6 + $0x70] sm:$0xff]
          %v382 = vld [vmem:[#allocation6 + $0x78] sm:$0xff]
          %v383 = vld [vmem:[%s2] sm:$0x1]
          %v385 = vlaneseq
          %v386 = vshrl.u32 %v385, 7
          %v387 = vsub.s32 0, %v386
          %v388 = vrot.slane %v383, %v387
          %390 = vmatprep.subr.mxu0 0.0
          %391 = vmatpush1.msra.mxu0 %v367
          %392 = vmatprep.subr.mxu0 0.0
          %393 = vmatpush1.msra.mxu0 %v368
          %394 = vmatprep.subr.mxu0 0.0
          %395 = vmatpush1.msra.mxu0 %v369
          %396 = vmatprep.subr.mxu0 0.0
          %397 = vmatpush1.msra.mxu0 %v370
          %398 = vmatprep.subr.mxu0 0.0
          %399 = vmatpush1.msra.mxu0 %v371
          %400 = vmatprep.subr.mxu0 0.0
          %401 = vmatpush1.msra.mxu0 %v372
          %402 = vmatprep.subr.mxu0 0.0
          %403 = vmatpush1.msra.mxu0 %v373
          %404 = vmatprep.subr.mxu0 0.0
          %405 = vmatpush1.msra.mxu0 %v374
          %406 = vmatprep.subr.mxu0 0.0
          %407 = vmatpush1.msra.mxu0 %v375
          %408 = vmatprep.subr.mxu0 0.0
          %409 = vmatpush1.msra.mxu0 %v376
          %410 = vmatprep.subr.mxu0 0.0
          %411 = vmatpush1.msra.mxu0 %v377
          %412 = vmatprep.subr.mxu0 0.0
          %413 = vmatpush1.msra.mxu0 %v378
          %414 = vmatprep.subr.mxu0 0.0
          %415 = vmatpush1.msra.mxu0 %v379
          %416 = vmatprep.subr.mxu0 0.0
          %417 = vmatpush1.msra.mxu0 %v380
          %418 = vmatprep.subr.mxu0 0.0
          %419 = vmatpush1.msra.mxu0 %v381
          %420 = vmatprep.subr.mxu0 0.0
          %421 = vmatpush1.msra.mxu0 %v382
          %422 = vmatprep.subr.mxu0 0.0
          %423 = vmatpush1.msra.mxu0 0.0
          %424 = vmatprep.subr.mxu0 0.0
          %425 = vmatpush1.msra.mxu0 0.0
          %426 = vmatprep.subr.mxu0 0.0
          %427 = vmatpush1.msra.mxu0 0.0
          %428 = vmatprep.subr.mxu0 0.0
          %429 = vmatpush1.msra.mxu0 0.0
          %430 = vmatprep.subr.mxu0 0.0
          %431 = vmatpush1.msra.mxu0 0.0
          %432 = vmatprep.subr.mxu0 0.0
          %433 = vmatpush1.msra.mxu0 0.0
          %434 = vmatprep.subr.mxu0 0.0
          %435 = vmatpush1.msra.mxu0 0.0
          %436 = vmatprep.subr.mxu0 0.0
          %437 = vmatpush1.msra.mxu0 0.0
          %438 = vmatprep.subr.mxu0 0.0
          %439 = vmatpush1.msra.mxu0 0.0
          %440 = vmatprep.subr.mxu0 0.0
          %441 = vmatpush1.msra.mxu0 0.0
          %442 = vmatprep.subr.mxu0 0.0
          %443 = vmatpush1.msra.mxu0 0.0
          %444 = vmatprep.subr.mxu0 0.0
          %445 = vmatpush1.msra.mxu0 0.0
          %446 = vmatprep.subr.mxu0 0.0
          %447 = vmatpush1.msra.mxu0 0.0
          %448 = vmatprep.subr.mxu0 0.0
          %449 = vmatpush1.msra.mxu0 0.0
          %450 = vmatprep.subr.mxu0 0.0
          %451 = vmatpush1.msra.mxu0 0.0
          %452 = vmatprep.subr.mxu0 0.0
          %453 = vmatpush1.msra.mxu0 0.0
          %454 = vmatprep.mubr.f32.mxu0 0.0
          %455 = vmatmul.mubr.f32.gmra.mrb[0].mxu0 %v366
          %v456 = vpop.f32.mrb[0].mxu0
          %v457 = vadd.f32 %v388, %v456
          %v458 = vpop.f32.mrb[0].mxu0
          %459 = vdwg.mxu0
          %v460 = vmax.f32 %v457, 0.0
          %461 = vst [vmem:[#allocation2] sm:$0xff] %v460
        $region68: #{tpu_custom_call.1} parent=47 // pred_fallthru
          _
        %v462 = vld [vmem:[#allocation2] sm:$0xff]
        %v463 = vld [vmem:[%s326] sm:$0xff]
        %v464 = vld [vmem:[%s326 + $0x8] sm:$0xff]
        %v465 = vld [vmem:[%s326 + $0x10] sm:$0xff]
        %v466 = vld [vmem:[%s326 + $0x18] sm:$0xff]
        %v467 = vld [vmem:[%s326 + $0x20] sm:$0xff]
        %v468 = vld [vmem:[%s326 + $0x28] sm:$0xff]
        %v469 = vld [vmem:[%s326 + $0x30] sm:$0xff]
        %v470 = vld [vmem:[%s326 + $0x38] sm:$0xff]
        %v471 = vld [vmem:[%s326 + $0x40] sm:$0xff]
        %v472 = vld [vmem:[%s326 + $0x48] sm:$0xff]
        %v473 = vld [vmem:[%s326 + $0x50] sm:$0xff]
        %v474 = vld [vmem:[%s326 + $0x58] sm:$0xff]
        %v475 = vld [vmem:[%s326 + $0x60] sm:$0xff]
        %v476 = vld [vmem:[%s326 + $0x68] sm:$0xff]
        %v477 = vld [vmem:[%s326 + $0x70] sm:$0xff]
        %v478 = vld [vmem:[%s326 + $0x78] sm:$0xff]
        %v479 = vld [vmem:[%s361] sm:$0x1]
        %v481 = vlaneseq
        %v482 = vshrl.u32 %v481, 7
        %v483 = vsub.s32 0, %v482
        %v484 = vrot.slane %v479, %v483
        %486 = vmatprep.subr.mxu0 0.0
        %487 = vmatpush1.msra.mxu0 %v463
        %488 = vmatprep.subr.mxu0 0.0
        %489 = vmatpush1.msra.mxu0 %v464
        %490 = vmatprep.subr.mxu0 0.0
        %491 = vmatpush1.msra.mxu0 %v465
        %492 = vmatprep.subr.mxu0 0.0
        %493 = vmatpush1.msra.mxu0 %v466
        %494 = vmatprep.subr.mxu0 0.0
        %495 = vmatpush1.msra.mxu0 %v467
        %496 = vmatprep.subr.mxu0 0.0
        %497 = vmatpush1.msra.mxu0 %v468
        %498 = vmatprep.subr.mxu0 0.0
        %499 = vmatpush1.msra.mxu0 %v469
        %500 = vmatprep.subr.mxu0 0.0
        %501 = vmatpush1.msra.mxu0 %v470
        %502 = vmatprep.subr.mxu0 0.0
        %503 = vmatpush1.msra.mxu0 %v471
        %504 = vmatprep.subr.mxu0 0.0
        %505 = vmatpush1.msra.mxu0 %v472
        %506 = vmatprep.subr.mxu0 0.0
        %507 = vmatpush1.msra.mxu0 %v473
        %508 = vmatprep.subr.mxu0 0.0
        %509 = vmatpush1.msra.mxu0 %v474
        %510 = vmatprep.subr.mxu0 0.0
        %511 = vmatpush1.msra.mxu0 %v475
        %512 = vmatprep.subr.mxu0 0.0
        %513 = vmatpush1.msra.mxu0 %v476
        %514 = vmatprep.subr.mxu0 0.0
        %515 = vmatpush1.msra.mxu0 %v477
        %516 = vmatprep.subr.mxu0 0.0
        %517 = vmatpush1.msra.mxu0 %v478
        %518 = vmatprep.subr.mxu0 0.0
        %519 = vmatpush1.msra.mxu0 0.0
        %520 = vmatprep.subr.mxu0 0.0
        %521 = vmatpush1.msra.mxu0 0.0
        %522 = vmatprep.subr.mxu0 0.0
        %523 = vmatpush1.msra.mxu0 0.0
        %524 = vmatprep.subr.mxu0 0.0
        %525 = vmatpush1.msra.mxu0 0.0
        %526 = vmatprep.subr.mxu0 0.0
        %527 = vmatpush1.msra.mxu0 0.0
        %528 = vmatprep.subr.mxu0 0.0
        %529 = vmatpush1.msra.mxu0 0.0
        %530 = vmatprep.subr.mxu0 0.0
        %531 = vmatpush1.msra.mxu0 0.0
        %532 = vmatprep.subr.mxu0 0.0
        %533 = vmatpush1.msra.mxu0 0.0
        %534 = vmatprep.subr.mxu0 0.0
        %535 = vmatpush1.msra.mxu0 0.0
        %536 = vmatprep.subr.mxu0 0.0
        %537 = vmatpush1.msra.mxu0 0.0
        %538 = vmatprep.subr.mxu0 0.0
        %539 = vmatpush1.msra.mxu0 0.0
        %540 = vmatprep.subr.mxu0 0.0
        %541 = vmatpush1.msra.mxu0 0.0
        %542 = vmatprep.subr.mxu0 0.0
        %543 = vmatpush1.msra.mxu0 0.0
        %544 = vmatprep.subr.mxu0 0.0
        %545 = vmatpush1.msra.mxu0 0.0
        %546 = vmatprep.subr.mxu0 0.0
        %547 = vmatpush1.msra.mxu0 0.0
        %548 = vmatprep.subr.mxu0 0.0
        %549 = vmatpush1.msra.mxu0 0.0
        %550 = vmatprep.mubr.f32.mxu0 0.0
        %551 = vmatmul.mubr.f32.gmra.mrb[0].mxu0 %v462
        %v552 = vpop.f32.mrb[0].mxu0
        %v553 = vadd.f32 %v484, %v552
        %v554 = vpop.f32.mrb[0].mxu0
        %555 = vdwg.mxu0
        %v556 = vmax.f32 %v553, 0.0
        %557 = vst [vmem:[#allocation2] sm:$0xff] %v556
        %p558 = scmp.eq.s32.totalorder %s26, 1
        // Predicated region
        $region69: #{tpu_custom_call.1} parent=47 // pred_check
          %p559 = pneg %p558
        $region70: #{tpu_custom_call.1} parent=47 // pred_check_branch
          %561 = sbr.rel (%p559) target = $region72
        $region71: #{tpu_custom_call.1} parent=47 // pred_region
          %v562 = vld [vmem:[#allocation2] sm:$0xff]
          %v563 = vld [vmem:[#allocation9] sm:$0xff]
          %v564 = vld [vmem:[#allocation9 + $0x8] sm:$0xff]
          %v565 = vld [vmem:[#allocation9 + $0x10] sm:$0xff]
          %v566 = vld [vmem:[#allocation9 + $0x18] sm:$0xff]
          %v567 = vld [vmem:[#allocation9 + $0x20] sm:$0xff]
          %v568 = vld [vmem:[#allocation9 + $0x28] sm:$0xff]
          %v569 = vld [vmem:[#allocation9 + $0x30] sm:$0xff]
          %v570 = vld [vmem:[#allocation9 + $0x38] sm:$0xff]
          %v571 = vld [vmem:[#allocation9 + $0x40] sm:$0xff]
          %v572 = vld [vmem:[#allocation9 + $0x48] sm:$0xff]
          %v573 = vld [vmem:[#allocation9 + $0x50] sm:$0xff]
          %v574 = vld [vmem:[#allocation9 + $0x58] sm:$0xff]
          %v575 = vld [vmem:[#allocation9 + $0x60] sm:$0xff]
          %v576 = vld [vmem:[#allocation9 + $0x68] sm:$0xff]
          %v577 = vld [vmem:[#allocation9 + $0x70] sm:$0xff]
          %v578 = vld [vmem:[#allocation9 + $0x78] sm:$0xff]
          %v579 = vld [vmem:[%s6] sm:$0x1]
          %v581 = vlaneseq
          %v582 = vshrl.u32 %v581, 7
          %v583 = vsub.s32 0, %v582
          %v584 = vrot.slane %v579, %v583
          %586 = vmatprep.subr.mxu0 0.0
          %587 = vmatpush1.msra.mxu0 %v563
          %588 = vmatprep.subr.mxu0 0.0
          %589 = vmatpush1.msra.mxu0 %v564
          %590 = vmatprep.subr.mxu0 0.0
          %591 = vmatpush1.msra.mxu0 %v565
          %592 = vmatprep.subr.mxu0 0.0
          %593 = vmatpush1.msra.mxu0 %v566
          %594 = vmatprep.subr.mxu0 0.0
          %595 = vmatpush1.msra.mxu0 %v567
          %596 = vmatprep.subr.mxu0 0.0
          %597 = vmatpush1.msra.mxu0 %v568
          %598 = vmatprep.subr.mxu0 0.0
          %599 = vmatpush1.msra.mxu0 %v569
          %600 = vmatprep.subr.mxu0 0.0
          %601 = vmatpush1.msra.mxu0 %v570
          %602 = vmatprep.subr.mxu0 0.0
          %603 = vmatpush1.msra.mxu0 %v571
          %604 = vmatprep.subr.mxu0 0.0
          %605 = vmatpush1.msra.mxu0 %v572
          %606 = vmatprep.subr.mxu0 0.0
          %607 = vmatpush1.msra.mxu0 %v573
          %608 = vmatprep.subr.mxu0 0.0
          %609 = vmatpush1.msra.mxu0 %v574
          %610 = vmatprep.subr.mxu0 0.0
          %611 = vmatpush1.msra.mxu0 %v575
          %612 = vmatprep.subr.mxu0 0.0
          %613 = vmatpush1.msra.mxu0 %v576
          %614 = vmatprep.subr.mxu0 0.0
          %615 = vmatpush1.msra.mxu0 %v577
          %616 = vmatprep.subr.mxu0 0.0
          %617 = vmatpush1.msra.mxu0 %v578
          %618 = vmatprep.subr.mxu0 0.0
          %619 = vmatpush1.msra.mxu0 0.0
          %620 = vmatprep.subr.mxu0 0.0
          %621 = vmatpush1.msra.mxu0 0.0
          %622 = vmatprep.subr.mxu0 0.0
          %623 = vmatpush1.msra.mxu0 0.0
          %624 = vmatprep.subr.mxu0 0.0
          %625 = vmatpush1.msra.mxu0 0.0
          %626 = vmatprep.subr.mxu0 0.0
          %627 = vmatpush1.msra.mxu0 0.0
          %628 = vmatprep.subr.mxu0 0.0
          %629 = vmatpush1.msra.mxu0 0.0
          %630 = vmatprep.subr.mxu0 0.0
          %631 = vmatpush1.msra.mxu0 0.0
          %632 = vmatprep.subr.mxu0 0.0
          %633 = vmatpush1.msra.mxu0 0.0
          %634 = vmatprep.subr.mxu0 0.0
          %635 = vmatpush1.msra.mxu0 0.0
          %636 = vmatprep.subr.mxu0 0.0
          %637 = vmatpush1.msra.mxu0 0.0
          %638 = vmatprep.subr.mxu0 0.0
          %639 = vmatpush1.msra.mxu0 0.0
          %640 = vmatprep.subr.mxu0 0.0
          %641 = vmatpush1.msra.mxu0 0.0
          %642 = vmatprep.subr.mxu0 0.0
          %643 = vmatpush1.msra.mxu0 0.0
          %644 = vmatprep.subr.mxu0 0.0
          %645 = vmatpush1.msra.mxu0 0.0
          %646 = vmatprep.subr.mxu0 0.0
          %647 = vmatpush1.msra.mxu0 0.0
          %648 = vmatprep.subr.mxu0 0.0
          %649 = vmatpush1.msra.mxu0 0.0
          %650 = vmatprep.mubr.f32.mxu0 0.0
          %651 = vmatmul.mubr.f32.gmra.mrb[0].mxu0 %v562
          %v652 = vpop.f32.mrb[0].mxu0
          %v653 = vadd.f32 %v584, %v652
          %v654 = vpop.f32.mrb[0].mxu0
          %655 = vdwg.mxu0
          %656 = vst [vmem:[#allocation10] sm:$0xff] %v653
        $region72: #{tpu_custom_call.1} parent=47 // pred_fallthru
          _
        // Predicated region
        $region73: #{tpu_custom_call.1} parent=47 // pred_check
          %p657 = pneg %p213
        $region74: #{tpu_custom_call.1} parent=47 // pred_check_branch
          %659 = sbr.rel (%p657) target = $region76
        $region75: #{tpu_custom_call.1} parent=47 // pred_region
          %s661 = ssub.s32 128, 128
          %662 = vsyncadd [#allocation5], %s661
          %s663 = smul.addr %s25, 128
          %s664 = scalar_lea.hbm %s7, %s663
          %s666 = sshll.u32 [#allocation10], 4
          %s667 = int_to_ptr.vmem [resolvable:$true] %s666
          %669 = dma.vmem_to_hbm [thread:$0]  %s667, 128, %s664, [#allocation5]
        $region76: #{tpu_custom_call.1} parent=47 // pred_fallthru
          _
        // Predicated region
        $region77: #{tpu_custom_call.1} parent=47 // pred_check
          %p670 = pneg %p213
        $region78: #{tpu_custom_call.1} parent=47 // pred_check_branch
          %672 = sbr.rel (%p670) target = $region80
        $region79: #{tpu_custom_call.1} parent=47 // pred_region
          %673 = dma.done [#allocation5], 128
        $region80: #{tpu_custom_call.1} parent=47 // pred_fallthru
          _
      $region48: #{tpu_custom_call.1} parent=5 // pred_fallthru
        _
      %p674 = scmp.le.s32.totalorder 2, %s16
      // Predicated region
      $region81: #{tpu_custom_call.1} parent=5 // pred_check
        %p675 = pneg %p674
      $region82: #{tpu_custom_call.1} parent=5 // pred_check_branch
        %677 = sbr.rel (%p675) target = $region84
      $region83: #{tpu_custom_call.1} parent=5 // pred_region
        %s678 = ssub.s32 %s16, 2
      $region84: #{tpu_custom_call.1} parent=5 // pred_fallthru
        _
    $region6: #{tpu_custom_call.1} parent=1 // loop_footer
      %s20 = sadd.s32 1, %s16
    $region7: #{tpu_custom_call.1} parent=1 // loop_footer_branch
      %15 = sbr.rel target = $region3
    $region8: #{tpu_custom_call.1} parent=1 // loop_exit
      _
    %679 = vsyncpa [#allocation4], 1
    %s680 = scalar_lea.sflag [#allocation4], 1
    %681 = vsyncpa %s680, 1
    %682 = vsyncpa [#allocation7], 1
    %683 = vsyncpa [#allocation5], 1
    %s684 = scalar_lea.sflag [#allocation5], 1
    %685 = vsyncpa %s684, 1

</llo_original>
